<compile_context>
chip_gen: v5e
topology: v5e:2x2
jax: 0.10.0
libtpu: 0.0.40
codegen_flags: <defaults>
</compile_context>

<pallas_src>
import jax
import jax.numpy as jnp
from jax.experimental import pallas as pl
from jax.experimental.pallas import tpu as pltpu

H_PAD = 128   # padded hidden width (covers critic H and fused dueling 2*H)


def _round_up(x, m):
    return ((x + m - 1) // m) * m


# ----------------------------- Pallas kernel --------------------------------

def _mlp3_kernel(x_ref, w1_ref, b1_ref, w2_ref, b2_ref, w3_ref, b3_ref, o_ref):
    """3-layer MLP: tanh(fc1) -> tanh(fc2) -> fc3.

    Serves both paths of DNN.forward:
      * av=False: plain critic MLP.
      * av=True : a/v heads fused at pack time (concat layer-1, block-diagonal
        layer-2) and the dueling combine folded into layer-3, so no epilogue
        work remains in the kernel.

    Weights are bf16 (MXU-native); accumulation, bias add and tanh are f32.
    Zero-padded lanes stay exactly zero through all three layers.
    """
    x = x_ref[...].astype(jnp.bfloat16)
    h = jnp.tanh(jnp.dot(x, w1_ref[...],
                         preferred_element_type=jnp.float32) + b1_ref[...])
    h = jnp.tanh(jnp.dot(h.astype(jnp.bfloat16), w2_ref[...],
                         preferred_element_type=jnp.float32) + b2_ref[...])
    y = (jnp.dot(h.astype(jnp.bfloat16), w3_ref[...],
                 preferred_element_type=jnp.float32) + b3_ref[...])
    # TODO(synk): optionally emit bf16 output if downstream tolerates it
    # (halves the dominant HBM write stream at RL-scale batches).
    o_ref[...] = y.astype(o_ref.dtype)


# ------------------------------ JAX wrapper ----------------------------------

def _run_mlp(obs, packed, out_dim, block_b=1024):
    """Batch-tiled driver; weights stay VMEM-resident across grid steps."""
    B, K = obs.shape
    out_w = packed[-1].shape[-1]            # padded output width (multiple of 8)

    B_pad = _round_up(B, 8)
    if B_pad != B:
        obs = jnp.pad(obs, ((0, B_pad - B), (0, 0)))

    block_b = max(8, (block_b // 8) * 8)    # batch tile must be a multiple of 8
    TB = min(block_b, B_pad)
    # v7x has 2 TensorCores: give the "parallel" batch axis >= 2 grid steps to
    # shard over whenever there is enough batch to split.
    if B_pad >= 16 and pl.cdiv(B_pad, TB) < 2:
        TB = max(8, _round_up(pl.cdiv(B_pad, 2), 8))
    grid = (pl.cdiv(B_pad, TB),)            # ragged last tile handled by Pallas

    in_specs = [pl.BlockSpec((TB, K), lambda i: (i, 0))]
    for p in packed:
        # full-array block, constant block index -> weights VMEM-resident
        in_specs.append(pl.BlockSpec(p.shape, lambda i: (0, 0)))

    out = pl.pallas_call(
        _mlp3_kernel,
        out_shape=jax.ShapeDtypeStruct((B_pad, out_w), jnp.float32),
        grid=grid,
        in_specs=in_specs,
        out_specs=pl.BlockSpec((TB, out_w), lambda i: (i, 0)),
        compiler_params=pltpu.CompilerParams(
            dimension_semantics=("parallel",)),   # megacore sharding on v7x
    )(obs, *packed)
    return out[:B, :out_dim]


def dnn_forward_critic(obs, packed, out_dim, block_b=1024):
    """av=False forward. obs: (B, input_len) f32."""
    return _run_mlp(obs, packed, out_dim, block_b)


def dnn_forward_av(obs, packed, out_dim, block_b=1024):
    """av=True forward (dueling). obs: (B, input_len) f32."""
    return _run_mlp(obs, packed, out_dim, block_b)


# ---------------------------- parameter packing ------------------------------

def pack_critic_params(p, input_len, hidden, out_dim):
    """Zero-pad critic weights to MXU-friendly tiles; weights cast to bf16."""
    assert hidden <= H_PAD
    out_w = _round_up(out_dim, 8)
    w1 = jnp.zeros((input_len, H_PAD), jnp.float32).at[:, :hidden].set(p["w1"])
    b1 = jnp.zeros((1, H_PAD), jnp.float32).at[:, :hidden].set(p["b1"])
    w2 = jnp.zeros((H_PAD, H_PAD), jnp.float32).at[:hidden, :hidden].set(p["w2"])
    b2 = jnp.zeros((1, H_PAD), jnp.float32).at[:, :hidden].set(p["b2"])
    w3 = jnp.zeros((H_PAD, out_w), jnp.float32).at[:hidden, :out_dim].set(p["w3"])
    b3 = jnp.zeros((1, out_w), jnp.float32).at[:, :out_dim].set(p["b3"])
    return (w1.astype(jnp.bfloat16), b1, w2.astype(jnp.bfloat16), b2,
            w3.astype(jnp.bfloat16), b3)


def pack_dueling_params(p, input_len, hidden, out_dim):
    """Fuse a/v heads AND fold the dueling combine into layer 3.

    Layer 1: [a_w1 | v_w1] concatenated on the output dim.
    Layer 2: block-diagonal [a_w2, 0; 0, v_w2].
    Layer 3: w3_eff[:h, i]   = a_w3[:, i] - mean_j a_w3[:, j]
             w3_eff[h:2h, i] = v_w3[:, 0]
             b3_eff[i]       = a_b3[i] - mean(a_b3) + v_b3
    so y = h_cat @ w3_eff + b3_eff == v + a - mean(a) (up to FP summation order).
    """
    h = hidden
    assert 2 * h <= H_PAD
    out_w = _round_up(out_dim, 8)
    w1 = (jnp.zeros((input_len, H_PAD), jnp.float32)
          .at[:, :h].set(p["a_w1"]).at[:, h:2 * h].set(p["v_w1"]))
    b1 = (jnp.zeros((1, H_PAD), jnp.float32)
          .at[:, :h].set(p["a_b1"]).at[:, h:2 * h].set(p["v_b1"]))
    w2 = (jnp.zeros((H_PAD, H_PAD), jnp.float32)
          .at[:h, :h].set(p["a_w2"]).at[h:2 * h, h:2 * h].set(p["v_w2"]))
    b2 = (jnp.zeros((1, H_PAD), jnp.float32)
          .at[:, :h].set(p["a_b2"]).at[:, h:2 * h].set(p["v_b2"]))

    a_w3_eff = p["a_w3"] - jnp.mean(p["a_w3"], axis=1, keepdims=True)  # (h, out)
    b3_eff = p["a_b3"] - jnp.mean(p["a_b3"], axis=-1, keepdims=True) + p["v_b3"]
    w3 = (jnp.zeros((H_PAD, out_w), jnp.float32)
          .at[:h, :out_dim].set(a_w3_eff)
          .at[h:2 * h, :out_dim].set(jnp.broadcast_to(p["v_w3"], (h, out_dim))))
    b3 = jnp.zeros((1, out_w), jnp.float32).at[:, :out_dim].set(b3_eff)
    return (w1.astype(jnp.bfloat16), b1, w2.astype(jnp.bfloat16), b2,
            w3.astype(jnp.bfloat16), b3)


# ------------------------- deterministic parameter init ----------------------

def _linear_params(key, in_dim, out_dim):
    # deterministic synthetic init (orthogonal-ish via scaled normal), bias = 0
    w = jax.random.normal(key, (in_dim, out_dim), jnp.float32) / jnp.sqrt(in_dim)
    b = jnp.zeros((1, out_dim), jnp.float32)
    return w, b


def make_params(key, input_len, hidden_dim, out_dim, av):
    keys = jax.random.split(key, 6)
    if av:
        a_w1, a_b1 = _linear_params(keys[0], input_len, hidden_dim)
        a_w2, a_b2 = _linear_params(keys[1], hidden_dim, hidden_dim)
        a_w3, a_b3 = _linear_params(keys[2], hidden_dim, out_dim)
        v_w1, v_b1 = _linear_params(keys[3], input_len, hidden_dim)
        v_w2, v_b2 = _linear_params(keys[4], hidden_dim, hidden_dim)
        v_w3, v_b3 = _linear_params(keys[5], hidden_dim, 1)
        return dict(a_w1=a_w1, a_b1=a_b1, a_w2=a_w2, a_b2=a_b2,
                    a_w3=a_w3, a_b3=a_b3,
                    v_w1=v_w1, v_b1=v_b1, v_w2=v_w2, v_b2=v_b2,
                    v_w3=v_w3, v_b3=v_b3)
    else:
        w1, b1 = _linear_params(keys[0], input_len, hidden_dim)
        w2, b2 = _linear_params(keys[1], hidden_dim, hidden_dim)
        w3, b3 = _linear_params(keys[2], hidden_dim, out_dim)
        return dict(w1=w1, b1=b1, w2=w2, b2=b2, w3=w3, b3=b3)


# ------------------------------ pure-JAX reference ----------------------------

def ref_critic(obs, p):
    h = jnp.tanh(obs @ p["w1"] + p["b1"])
    h = jnp.tanh(h @ p["w2"] + p["b2"])
    return h @ p["w3"] + p["b3"]


def ref_av(obs, p):
    a = jnp.tanh(obs @ p["a_w1"] + p["a_b1"])
    a = jnp.tanh(a @ p["a_w2"] + p["a_b2"])
    a = a @ p["a_w3"] + p["a_b3"]
    v = jnp.tanh(obs @ p["v_w1"] + p["v_b1"])
    v = jnp.tanh(v @ p["v_w2"] + p["v_b2"])
    v = v @ p["v_w3"] + p["v_b3"]
    return v + a - a.mean(-1, keepdims=True)


# ----------------------------------- main -------------------------------------

if __name__ == "__main__":
    INPUT_LEN, HIDDEN, OUT_DIM = 16, 32, 6

    key = jax.random.PRNGKey(0)
    k_obs, k_p1, k_p2 = jax.random.split(key, 3)

    p_critic = make_params(k_p1, INPUT_LEN, HIDDEN, OUT_DIM, av=False)
    packed_critic = pack_critic_params(p_critic, INPUT_LEN, HIDDEN, OUT_DIM)
    p_av = make_params(k_p2, INPUT_LEN, HIDDEN, OUT_DIM, av=True)
    packed_av = pack_dueling_params(p_av, INPUT_LEN, HIDDEN, OUT_DIM)

    # bf16 MXU inputs + folded dueling mean change FP rounding / summation
    # order vs. the f32 reference, so the tolerance is bf16-aware.
    TOL = 5e-2

    for B in (8, 10):   # B=10 exercises batch padding and a 2-step grid
        obs = jax.random.normal(k_obs, (B, INPUT_LEN), jnp.float32)

        # av=False (plain critic MLP)
        out_c = jax.block_until_ready(
            dnn_forward_critic(obs, packed_critic, OUT_DIM))
        assert out_c.shape == (B, OUT_DIM)
        assert jnp.allclose(out_c, ref_critic(obs, p_critic),
                            atol=TOL, rtol=TOL)

        # av=True (fused dueling a/v heads, combine folded into layer 3)
        out_a = jax.block_until_ready(dnn_forward_av(obs, packed_av, OUT_DIM))
        assert out_a.shape == (B, OUT_DIM)
        assert jnp.allclose(out_a, ref_av(obs, p_av), atol=TOL, rtol=TOL)

    print("KERNEL_OK")
</pallas_src>

<mosaic_0001>
module attributes {stable_mosaic.version = 11 : i64} {
  func.func @_mlp3_kernel(%arg0: i32, %arg1: memref<8x16xf32, #tpu.memory_space<vmem>>, %arg2: memref<16x128xbf16, #tpu.memory_space<vmem>>, %arg3: memref<1x128xf32, #tpu.memory_space<vmem>>, %arg4: memref<128x128xbf16, #tpu.memory_space<vmem>>, %arg5: memref<1x128xf32, #tpu.memory_space<vmem>>, %arg6: memref<128x8xbf16, #tpu.memory_space<vmem>>, %arg7: memref<1x8xf32, #tpu.memory_space<vmem>>, %arg8: memref<8x8xf32, #tpu.memory_space<vmem>>) attributes {dimension_semantics = [#tpu.dimension_semantics<parallel>], iteration_bounds = array<i64: 1>, scalar_prefetch = 0 : i64, scratch_operands = 0 : i64, tpu.core_type = #tpu.core_type<tc>, window_params = [{transform_indices = @transform_0, window_bounds = array<i64: 8, 16>}, {pipeline_mode = #tpu.pipeline_mode<synchronous>, transform_indices = @transform_1, window_bounds = array<i64: 16, 128>}, {pipeline_mode = #tpu.pipeline_mode<synchronous>, transform_indices = @transform_2, window_bounds = array<i64: 1, 128>}, {pipeline_mode = #tpu.pipeline_mode<synchronous>, transform_indices = @transform_3, window_bounds = array<i64: 128, 128>}, {pipeline_mode = #tpu.pipeline_mode<synchronous>, transform_indices = @transform_4, window_bounds = array<i64: 1, 128>}, {pipeline_mode = #tpu.pipeline_mode<synchronous>, transform_indices = @transform_5, window_bounds = array<i64: 128, 8>}, {pipeline_mode = #tpu.pipeline_mode<synchronous>, transform_indices = @transform_6, window_bounds = array<i64: 1, 8>}, {transform_indices = @transform_7, window_bounds = array<i64: 8, 8>}]} {
    %c0 = arith.constant 0 : index
    %c0_0 = arith.constant 0 : index
    %0 = vector.load %arg1[%c0, %c0_0] : memref<8x16xf32, #tpu.memory_space<vmem>>, vector<8x16xf32>
    %1 = arith.truncf %0 : vector<8x16xf32> to vector<8x16xbf16>
    %c0_1 = arith.constant 0 : index
    %c0_2 = arith.constant 0 : index
    %2 = vector.load %arg2[%c0_1, %c0_2] : memref<16x128xbf16, #tpu.memory_space<vmem>>, vector<16x128xbf16>
    %cst = arith.constant dense<0.000000e+00> : vector<8x128xf32>
    %3 = tpu.matmul %1, %2, %cst {dimension_numbers = #tpu.dot_dimension_numbers<[1], [0], [0], [1], [0, 0, 1, 1], [], []>} : vector<8x16xbf16>, vector<16x128xbf16>, vector<8x128xf32> -> vector<8x128xf32>
    %c0_3 = arith.constant 0 : index
    %c0_4 = arith.constant 0 : index
    %4 = vector.load %arg3[%c0_3, %c0_4] : memref<1x128xf32, #tpu.memory_space<vmem>>, vector<1x128xf32>
    %5 = vector.broadcast %4 : vector<1x128xf32> to vector<8x128xf32>
    %6 = arith.addf %3, %5 : vector<8x128xf32>
    %7 = math.tanh %6 : vector<8x128xf32>
    %8 = arith.truncf %7 : vector<8x128xf32> to vector<8x128xbf16>
    %c0_5 = arith.constant 0 : index
    %c0_6 = arith.constant 0 : index
    %9 = vector.load %arg4[%c0_5, %c0_6] : memref<128x128xbf16, #tpu.memory_space<vmem>>, vector<128x128xbf16>
    %cst_7 = arith.constant dense<0.000000e+00> : vector<8x128xf32>
    %10 = tpu.matmul %8, %9, %cst_7 {dimension_numbers = #tpu.dot_dimension_numbers<[1], [0], [0], [1], [0, 0, 1, 1], [], []>} : vector<8x128xbf16>, vector<128x128xbf16>, vector<8x128xf32> -> vector<8x128xf32>
    %c0_8 = arith.constant 0 : index
    %c0_9 = arith.constant 0 : index
    %11 = vector.load %arg5[%c0_8, %c0_9] : memref<1x128xf32, #tpu.memory_space<vmem>>, vector<1x128xf32>
    %12 = vector.broadcast %11 : vector<1x128xf32> to vector<8x128xf32>
    %13 = arith.addf %10, %12 : vector<8x128xf32>
    %14 = math.tanh %13 : vector<8x128xf32>
    %15 = arith.truncf %14 : vector<8x128xf32> to vector<8x128xbf16>
    %c0_10 = arith.constant 0 : index
    %c0_11 = arith.constant 0 : index
    %16 = vector.load %arg6[%c0_10, %c0_11] : memref<128x8xbf16, #tpu.memory_space<vmem>>, vector<128x8xbf16>
    %cst_12 = arith.constant dense<0.000000e+00> : vector<8x8xf32>
    %17 = tpu.matmul %15, %16, %cst_12 {dimension_numbers = #tpu.dot_dimension_numbers<[1], [0], [0], [1], [0, 0, 1, 1], [], []>} : vector<8x128xbf16>, vector<128x8xbf16>, vector<8x8xf32> -> vector<8x8xf32>
    %c0_13 = arith.constant 0 : index
    %c0_14 = arith.constant 0 : index
    %18 = vector.load %arg7[%c0_13, %c0_14] : memref<1x8xf32, #tpu.memory_space<vmem>>, vector<1x8xf32>
    %19 = vector.broadcast %18 : vector<1x8xf32> to vector<8x8xf32>
    %20 = arith.addf %17, %19 : vector<8x8xf32>
    %c0_15 = arith.constant 0 : index
    %c0_16 = arith.constant 0 : index
    %21 = vector.load %arg8[%c0_15, %c0_16] : memref<8x8xf32, #tpu.memory_space<vmem>>, vector<8x8xf32>
    tpu.vector_store %arg8[%c0_15, %c0_16], %20 {strides = array<i32>} : memref<8x8xf32, #tpu.memory_space<vmem>>, vector<8x8xf32>,
    return
  }
  func.func @transform_0(%arg0: i32) -> (i32, i32) {
    %c0_i32 = arith.constant 0 : i32
    %c0_i32_0 = arith.constant 0 : i32
    return %arg0, %c0_i32 : i32, i32
  }
  func.func @transform_1(%arg0: i32) -> (i32, i32) {
    %c0_i32 = arith.constant 0 : i32
    %c0_i32_0 = arith.constant 0 : i32
    %c0_i32_1 = arith.constant 0 : i32
    return %c0_i32, %c0_i32_0 : i32, i32
  }
  func.func @transform_2(%arg0: i32) -> (i32, i32) {
    %c0_i32 = arith.constant 0 : i32
    %c0_i32_0 = arith.constant 0 : i32
    %c0_i32_1 = arith.constant 0 : i32
    return %c0_i32, %c0_i32_0 : i32, i32
  }
  func.func @transform_3(%arg0: i32) -> (i32, i32) {
    %c0_i32 = arith.constant 0 : i32
    %c0_i32_0 = arith.constant 0 : i32
    %c0_i32_1 = arith.constant 0 : i32
    return %c0_i32, %c0_i32_0 : i32, i32
  }
  func.func @transform_4(%arg0: i32) -> (i32, i32) {
    %c0_i32 = arith.constant 0 : i32
    %c0_i32_0 = arith.constant 0 : i32
    %c0_i32_1 = arith.constant 0 : i32
    return %c0_i32, %c0_i32_0 : i32, i32
  }
  func.func @transform_5(%arg0: i32) -> (i32, i32) {
    %c0_i32 = arith.constant 0 : i32
    %c0_i32_0 = arith.constant 0 : i32
    %c0_i32_1 = arith.constant 0 : i32
    return %c0_i32, %c0_i32_0 : i32, i32
  }
  func.func @transform_6(%arg0: i32) -> (i32, i32) {
    %c0_i32 = arith.constant 0 : i32
    %c0_i32_0 = arith.constant 0 : i32
    %c0_i32_1 = arith.constant 0 : i32
    return %c0_i32, %c0_i32_0 : i32, i32
  }
  func.func @transform_7(%arg0: i32) -> (i32, i32) {
    %c0_i32 = arith.constant 0 : i32
    %c0_i32_0 = arith.constant 0 : i32
    return %arg0, %c0_i32 : i32, i32
  }
}

</mosaic_0001>

<llo_original>
// kernel: tpu_custom_call.1
$region0: #{tpu_custom_call.1}
  #allocation0 [shape = 'u32[]', space=smem, size = 0x4, offset = 0x4, fixed_abs, tag = 'smem constant byte address 0x4 - core index']
  #allocation1 [shape = 'u32[72,128]{1,0:T(1,128)}', space=vmem, size = 0x9000, scoped, tag = 'internal scratch']
  %s0 = inlined_call_operand.hbm [shape: f32[8,16], index: 0, kind: input, shape index: {}]
  %s1 = inlined_call_operand.hbm [shape: bf16[16,128], index: 1, kind: input, shape index: {}]
  %s2 = inlined_call_operand.vmem [shape: f32[1,128], index: 2, kind: input, shape index: {}]
  %s3 = inlined_call_operand.vmem [shape: bf16[128,128], index: 3, kind: input, shape index: {}]
  %s4 = inlined_call_operand.vmem [shape: f32[1,128], index: 4, kind: input, shape index: {}]
  %s5 = inlined_call_operand.vmem [shape: bf16[128,8], index: 5, kind: input, shape index: {}]
  %s6 = inlined_call_operand.vmem [shape: f32[1,8], index: 6, kind: input, shape index: {}]
  %s7 = inlined_call_operand.hbm [shape: f32[8,8], index: 7, kind: output, shape index: {}]
  %s8 = sld [smem:[#allocation0]]
  $region46: #{tpu_custom_call.1} parent=0
    _
  %s10 = ssub.s32 1, %s8
  %s11 = scalar_select 0, %s10, %s8
  $region1: #{tpu_custom_call.1} parent=0
    #allocation2 [shape = 'u8[4096]{0}', space=vmem, size = 0x1000, scoped, tag = 'input window, operand 0, single buffered']
    #allocation3 [shape = 's32[1]{0}', space=sflag, size = 0x4, scoped, tag = 'scoped memory for tpu_custom_call.1']
    #allocation4 [shape = 's32[1]{0}', space=sflag, size = 0x4, scoped, tag = 'scoped memory for tpu_custom_call.1']
    #allocation5 [shape = 'u8[4096]{0}', space=vmem, size = 0x1000, scoped, tag = 'input window, operand 1, single buffered']
    #allocation6 [shape = 's32[1]{0}', space=sflag, size = 0x4, scoped, tag = 'scoped memory for tpu_custom_call.1']
    #allocation7 [shape = 'u8[4096]{0}', space=vmem, size = 0x1000, scoped, tag = 'output window, operand 0, single buffered']
    %12 = vsyncpa [#allocation3], 0
    %13 = vsyncpa [#allocation6], 0
    %14 = vsyncpa [#allocation4], 0
    // Predicated region
    $region2: #{tpu_custom_call.1} parent=1 // pred_check
      _
    $region3: #{tpu_custom_call.1} parent=1 // pred_check_branch
      %16 = sbr.rel (0) target = $region5
    $region4: #{tpu_custom_call.1} parent=1 // pred_region
      %18 = vsyncadd [#allocation3], 0
      %s20 = sshll.u32 %s0, 4
      %s21 = int_to_ptr.hbm [resolvable:$true] %s20
      %s22 = sshll.u32 [#allocation2], 4
      %s23 = int_to_ptr.vmem [resolvable:$true] %s22
      %25 = dma.hbm_to_vmem [thread:$0]  %s21, 128, %s23, [#allocation3]
    $region5: #{tpu_custom_call.1} parent=1 // pred_fallthru
      _
    // Predicated region
    $region6: #{tpu_custom_call.1} parent=1 // pred_check
      _
    $region7: #{tpu_custom_call.1} parent=1 // pred_check_branch
      %27 = sbr.rel (0) target = $region9
    $region8: #{tpu_custom_call.1} parent=1 // pred_region
      %29 = vsyncadd [#allocation6], 0
      %s30 = sshll.u32 %s1, 4
      %s31 = int_to_ptr.hbm [resolvable:$true] %s30
      %s32 = sshll.u32 [#allocation5], 4
      %s33 = int_to_ptr.vmem [resolvable:$true] %s32
      %38 = dma.hbm_to_vmem [thread:$0]  %s31, 128, %s33, [#allocation6], 64, 64, 4
    $region9: #{tpu_custom_call.1} parent=1 // pred_fallthru
      _
    // Predicated region
    $region10: #{tpu_custom_call.1} parent=1 // pred_check
      _
    $region11: #{tpu_custom_call.1} parent=1 // pred_check_branch
      %40 = sbr.rel (0) target = $region13
    $region12: #{tpu_custom_call.1} parent=1 // pred_region
      _
    $region13: #{tpu_custom_call.1} parent=1 // pred_fallthru
      _
    // Predicated region
    $region14: #{tpu_custom_call.1} parent=1 // pred_check
      _
    $region15: #{tpu_custom_call.1} parent=1 // pred_check_branch
      %42 = sbr.rel (0) target = $region17
    $region16: #{tpu_custom_call.1} parent=1 // pred_region
      _
    $region17: #{tpu_custom_call.1} parent=1 // pred_fallthru
      _
    // Predicated region
    $region18: #{tpu_custom_call.1} parent=1 // pred_check
      _
    $region19: #{tpu_custom_call.1} parent=1 // pred_check_branch
      %44 = sbr.rel (0) target = $region21
    $region20: #{tpu_custom_call.1} parent=1 // pred_region
      _
    $region21: #{tpu_custom_call.1} parent=1 // pred_fallthru
      _
    // Predicated region
    $region22: #{tpu_custom_call.1} parent=1 // pred_check
      _
    $region23: #{tpu_custom_call.1} parent=1 // pred_check_branch
      %46 = sbr.rel (0) target = $region25
    $region24: #{tpu_custom_call.1} parent=1 // pred_region
      _
    $region25: #{tpu_custom_call.1} parent=1 // pred_fallthru
      _
    // Predicated region
    $region26: #{tpu_custom_call.1} parent=1 // pred_check
      _
    $region27: #{tpu_custom_call.1} parent=1 // pred_check_branch
      %48 = sbr.rel (0) target = $region29
    $region28: #{tpu_custom_call.1} parent=1 // pred_region
      _
    $region29: #{tpu_custom_call.1} parent=1 // pred_fallthru
      _
    // Predicated region
    $region30: #{tpu_custom_call.1} parent=1 // pred_check
      _
    $region31: #{tpu_custom_call.1} parent=1 // pred_check_branch
      %50 = sbr.rel (0) target = $region33
    $region32: #{tpu_custom_call.1} parent=1 // pred_region
      %52 = dma.done [#allocation3], 128
    $region33: #{tpu_custom_call.1} parent=1 // pred_fallthru
      _
    // Predicated region
    $region34: #{tpu_custom_call.1} parent=1 // pred_check
      _
    $region35: #{tpu_custom_call.1} parent=1 // pred_check_branch
      %54 = sbr.rel (0) target = $region37
    $region36: #{tpu_custom_call.1} parent=1 // pred_region
      %56 = dma.done [#allocation6], 128
    $region37: #{tpu_custom_call.1} parent=1 // pred_fallthru
      _
    %v58 = vld [vmem:[#allocation2] sm:$0xff]
    %v59 = vpack.c.bf16 %v58, %v58
    %v60 = vld [vmem:[#allocation5] sm:$0xf]
    %v61 = vld [vmem:[#allocation5 + $0x4] sm:$0xf]
    %v62 = vld [vmem:[%s2] sm:$0x1]
    %v64 = vperm.slane %v62, 0
    %v68 = vunpack.c.l.b16 %v60
    %v69 = vunpack.c.l.b16 %v61
    %v70 = vpack.c.b16 %v69, %v68
    %vm72 = vcmask 130048
    %v74 = vsel %vm72, %v59, 0
    %76 = vmatpush.bf16.msra.mxu0 0
    %77 = vmatpush.bf16.msra.mxu0 0
    %78 = vmatpush.bf16.msra.mxu0 0
    %79 = vmatpush.bf16.msra.mxu0 0
    %80 = vmatpush.bf16.msra.mxu0 0
    %81 = vmatpush.bf16.msra.mxu0 0
    %82 = vmatpush.bf16.msra.mxu0 0
    %83 = vmatpush.bf16.msra.mxu0 %v70
    %84 = vmatmul.bf16.gmra.mxu0 %v74
    %v85 = vpop.f32.mrf.mxu0
    %v86 = vadd.f32 %v64, %v85
    %v87 = vpop.f32.mrf.mxu0
    %88 = vdwg.mxu0
    %v89 = vtanh.pop %v86
    %v90 = vpack.c.bf16 %v89, %v89
    %v91 = vld [vmem:[%s3] sm:$0xf]
    %v92 = vld [vmem:[%s3 + $0x4] sm:$0xf]
    %v93 = vld [vmem:[%s3 + $0x8] sm:$0xf]
    %v94 = vld [vmem:[%s3 + $0xc] sm:$0xf]
    %v95 = vld [vmem:[%s3 + $0x10] sm:$0xf]
    %v96 = vld [vmem:[%s3 + $0x14] sm:$0xf]
    %v97 = vld [vmem:[%s3 + $0x18] sm:$0xf]
    %v98 = vld [vmem:[%s3 + $0x1c] sm:$0xf]
    %v99 = vld [vmem:[%s3 + $0x20] sm:$0xf]
    %v100 = vld [vmem:[%s3 + $0x24] sm:$0xf]
    %v101 = vld [vmem:[%s3 + $0x28] sm:$0xf]
    %v102 = vld [vmem:[%s3 + $0x2c] sm:$0xf]
    %v103 = vld [vmem:[%s3 + $0x30] sm:$0xf]
    %v104 = vld [vmem:[%s3 + $0x34] sm:$0xf]
    %v105 = vld [vmem:[%s3 + $0x38] sm:$0xf]
    %v106 = vld [vmem:[%s3 + $0x3c] sm:$0xf]
    %v107 = vld [vmem:[%s4] sm:$0x1]
    %v109 = vperm.slane %v107, 0
    %v127 = vunpack.c.l.b16 %v91
    %v128 = vunpack.c.l.b16 %v92
    %v129 = vunpack.c.l.b16 %v93
    %v130 = vunpack.c.l.b16 %v94
    %v131 = vunpack.c.l.b16 %v95
    %v132 = vunpack.c.l.b16 %v96
    %v133 = vunpack.c.l.b16 %v97
    %v134 = vunpack.c.l.b16 %v98
    %v135 = vunpack.c.l.b16 %v99
    %v136 = vunpack.c.l.b16 %v100
    %v137 = vunpack.c.l.b16 %v101
    %v138 = vunpack.c.l.b16 %v102
    %v139 = vunpack.c.l.b16 %v103
    %v140 = vunpack.c.l.b16 %v104
    %v141 = vunpack.c.l.b16 %v105
    %v142 = vunpack.c.l.b16 %v106
    %v143 = vpack.c.b16 %v128, %v127
    %v144 = vpack.c.b16 %v130, %v129
    %v145 = vpack.c.b16 %v132, %v131
    %v146 = vpack.c.b16 %v134, %v133
    %v147 = vpack.c.b16 %v136, %v135
    %v148 = vpack.c.b16 %v138, %v137
    %v149 = vpack.c.b16 %v140, %v139
    %v150 = vpack.c.b16 %v142, %v141
    %159 = vmatpush.bf16.msra.mxu0 %v150
    %160 = vmatpush.bf16.msra.mxu0 %v149
    %161 = vmatpush.bf16.msra.mxu0 %v148
    %162 = vmatpush.bf16.msra.mxu0 %v147
    %163 = vmatpush.bf16.msra.mxu0 %v146
    %164 = vmatpush.bf16.msra.mxu0 %v145
    %165 = vmatpush.bf16.msra.mxu0 %v144
    %166 = vmatpush.bf16.msra.mxu0 %v143
    %167 = vmatmul.bf16.gmra.mxu0 %v90
    %v168 = vpop.f32.mrf.mxu0
    %v169 = vadd.f32 %v109, %v168
    %v170 = vpop.f32.mrf.mxu0
    %171 = vdwg.mxu0
    %v172 = vtanh.pop %v169
    %v173 = vpack.c.bf16 %v172, %v172
    %v174 = vld [vmem:[%s5] sm:$0xf]
    %v175 = vld [vmem:[%s5 + $0x4] sm:$0xf]
    %v176 = vld [vmem:[%s5 + $0x8] sm:$0xf]
    %v177 = vld [vmem:[%s5 + $0xc] sm:$0xf]
    %v178 = vld [vmem:[%s5 + $0x10] sm:$0xf]
    %v179 = vld [vmem:[%s5 + $0x14] sm:$0xf]
    %v180 = vld [vmem:[%s5 + $0x18] sm:$0xf]
    %v181 = vld [vmem:[%s5 + $0x1c] sm:$0xf]
    %v182 = vld [vmem:[%s5 + $0x20] sm:$0xf]
    %v183 = vld [vmem:[%s5 + $0x24] sm:$0xf]
    %v184 = vld [vmem:[%s5 + $0x28] sm:$0xf]
    %v185 = vld [vmem:[%s5 + $0x2c] sm:$0xf]
    %v186 = vld [vmem:[%s5 + $0x30] sm:$0xf]
    %v187 = vld [vmem:[%s5 + $0x34] sm:$0xf]
    %v188 = vld [vmem:[%s5 + $0x38] sm:$0xf]
    %v189 = vld [vmem:[%s5 + $0x3c] sm:$0xf]
    %v190 = vld [vmem:[%s6] sm:$0x1]
    %v192 = vperm.slane %v190, 0
    %v210 = vunpack.c.l.b16 %v174
    %v211 = vunpack.c.l.b16 %v175
    %v212 = vunpack.c.l.b16 %v176
    %v213 = vunpack.c.l.b16 %v177
    %v214 = vunpack.c.l.b16 %v178
    %v215 = vunpack.c.l.b16 %v179
    %v216 = vunpack.c.l.b16 %v180
    %v217 = vunpack.c.l.b16 %v181
    %v218 = vunpack.c.l.b16 %v182
    %v219 = vunpack.c.l.b16 %v183
    %v220 = vunpack.c.l.b16 %v184
    %v221 = vunpack.c.l.b16 %v185
    %v222 = vunpack.c.l.b16 %v186
    %v223 = vunpack.c.l.b16 %v187
    %v224 = vunpack.c.l.b16 %v188
    %v225 = vunpack.c.l.b16 %v189
    %v226 = vpack.c.b16 %v211, %v210
    %v227 = vpack.c.b16 %v213, %v212
    %v228 = vpack.c.b16 %v215, %v214
    %v229 = vpack.c.b16 %v217, %v216
    %v230 = vpack.c.b16 %v219, %v218
    %v231 = vpack.c.b16 %v221, %v220
    %v232 = vpack.c.b16 %v223, %v222
    %v233 = vpack.c.b16 %v225, %v224
    %242 = vmatpush.bf16.msra.mxu0 %v233
    %243 = vmatpush.bf16.msra.mxu0 %v232
    %244 = vmatpush.bf16.msra.mxu0 %v231
    %245 = vmatpush.bf16.msra.mxu0 %v230
    %246 = vmatpush.bf16.msra.mxu0 %v229
    %247 = vmatpush.bf16.msra.mxu0 %v228
    %248 = vmatpush.bf16.msra.mxu0 %v227
    %249 = vmatpush.bf16.msra.mxu0 %v226
    %250 = vmatmul.bf16.gmra.mxu0 %v173
    %v251 = vpop.f32.mrf.mxu0
    %v252 = vadd.f32 %v192, %v251
    %v253 = vpop.f32.mrf.mxu0
    %254 = vdwg.mxu0
    %vm255 = vcmask 64512
    %256 = vst.msk [vmem:[#allocation7] sm:$0xff] %vm255, %v252
    // Predicated region
    $region38: #{tpu_custom_call.1} parent=1 // pred_check
      _
    $region39: #{tpu_custom_call.1} parent=1 // pred_check_branch
      %258 = sbr.rel (0) target = $region41
    $region40: #{tpu_custom_call.1} parent=1 // pred_region
      %260 = vsyncadd [#allocation4], 0
      %s262 = sshll.u32 [#allocation7], 4
      %s263 = int_to_ptr.vmem [resolvable:$true] %s262
      %s264 = sshll.u32 %s7, 4
      %s265 = int_to_ptr.hbm [resolvable:$true] %s264
      %267 = dma.vmem_to_hbm [thread:$0]  %s263, 128, %s265, [#allocation4]
    $region41: #{tpu_custom_call.1} parent=1 // pred_fallthru
      _
    // Predicated region
    $region42: #{tpu_custom_call.1} parent=1 // pred_check
      _
    $region43: #{tpu_custom_call.1} parent=1 // pred_check_branch
      %269 = sbr.rel (0) target = $region45
    $region44: #{tpu_custom_call.1} parent=1 // pred_region
      %271 = dma.done [#allocation4], 128
    $region45: #{tpu_custom_call.1} parent=1 // pred_fallthru
      _
    %272 = vsyncpa [#allocation3], 1
    %273 = vsyncpa [#allocation6], 1
    %274 = vsyncpa [#allocation4], 1

</llo_original>
